<compile_context>
chip_gen: v7x
topology: tpu7x:2x2x1
jax: 0.10.0
libtpu: 0.0.40
codegen_flags: <defaults>
</compile_context>

<pallas_src>
import functools

import jax
import jax.numpy as jnp
import numpy as np
from jax import lax
from jax.experimental import pallas as pl
from jax.experimental.pallas import tpu as pltpu

EPS = 1e-5


def _round_up(x, m):
    return (x + m - 1) // m * m


# --------------------------------------------------------------------------
# Shared tile epilogue: pos + seg add, LayerNorm, store.
# --------------------------------------------------------------------------
def _finish_tile(hidden, n_segments, eps, seq_len,
                 gathered,      # (TN, HP) f32 — fused token rows (pad cols are 0)
                 seg_ids,       # (TN, 1) int32
                 pos_vals,      # (S, HP) f32
                 consts,        # (CR, HP) f32: rows 0..nseg-1 seg_tab, nseg gamma, nseg+1 beta
                 out_ref):      # (TN, HP)
    tn, hp = gathered.shape
    k = tn // seq_len           # number of sequences in this tile (static)

    # (TN,HP)->(k,S,HP) is layout-preserving (S % 8 == 0, HP % 128 == 0);
    # pos (S,HP) broadcasts over the k sequences.
    e = gathered.reshape(k, seq_len, hp) + pos_vals
    seg = seg_ids.reshape(k, seq_len, 1)

    # Segment embedding: tiny table -> VPU selects, no matmul.
    if n_segments == 2:
        e = e + jnp.where(seg == 0, consts[0:1, :], consts[1:2, :])
    else:
        for s in range(n_segments):
            e = e + jnp.where(seg == s, consts[s:s + 1, :], 0.0)

    # LayerNorm over the TRUE hidden dim. Pad columns of e are exactly zero,
    # so the mean sum over HP lanes is exact; for the variance use the
    # two-pass form with pad lanes masked (stability fix).
    inv_h = 1.0 / float(hidden)
    mean = jnp.sum(e, axis=-1, keepdims=True) * inv_h
    d = e - mean
    if hp != hidden:
        lane = lax.broadcasted_iota(jnp.int32, d.shape, d.ndim - 1)
        d = jnp.where(lane < hidden, d, 0.0)
    var = jnp.sum(d * d, axis=-1, keepdims=True) * inv_h
    inv = lax.rsqrt(var + eps)                      # EUP slot

    gamma = consts[n_segments:n_segments + 1, :]    # pad cols are 0
    beta = consts[n_segments + 1:n_segments + 2, :]
    out = d * inv * gamma + beta                    # pad cols stay 0
    out_ref[...] = out.reshape(tn, hp).astype(out_ref.dtype)


# --------------------------------------------------------------------------
# Path A: fused table resident in VMEM (small/medium vocab).
# --------------------------------------------------------------------------
def emb_kernel_vmem(hidden, n_segments, eps, seq_len,
                    ids_ref,        # SMEM (N,)      int32 (scalar prefetch)
                    seg_ref,        # VMEM (TN, 1)   int32
                    pos_ref,        # VMEM (S, HP)   f32   (resident)
                    consts_ref,     # VMEM (CR, HP)  f32   (resident)
                    tab_ref,        # VMEM (V, HP)   table dtype (resident)
                    out_ref,        # VMEM (TN, HP)  f32
                    gbuf):          # VMEM (TN, HP)  table dtype, scratch
    tn = out_ref.shape[0]
    base = pl.program_id(0) * tn

    # Token gather: per-row dynamic VMEM slice (no HBM DMAs at all).
    @pl.loop(0, tn)
    def _gather(r):
        tok = ids_ref[base + r]
        gbuf[pl.ds(r, 1), :] = tab_ref[pl.ds(tok, 1), :]

    _finish_tile(hidden, n_segments, eps, seq_len,
                 gbuf[...].astype(jnp.float32),
                 seg_ref[...], pos_ref[...], consts_ref[...], out_ref)


# --------------------------------------------------------------------------
# Path B: fused table in HBM, double-buffered per-row DMA gather.
# --------------------------------------------------------------------------
def emb_kernel_hbm(hidden, n_segments, eps, seq_len,
                   ids_ref,         # SMEM (N,)        int32 (scalar prefetch)
                   seg_ref,         # VMEM (TN, 1)     int32
                   pos_ref,         # VMEM (S, HP)     f32
                   consts_ref,      # VMEM (CR, HP)    f32
                   tab_hbm,         # ANY  (V, HP)     table dtype (stays in HBM)
                   out_ref,         # VMEM (TN, HP)    f32
                   gbuf,            # VMEM (2, TN, HP) table dtype, double buffer
                   dsem):           # DMA sem (2,)
    tn = out_ref.shape[0]
    i = pl.program_id(0)
    nt = pl.num_programs(0)

    def issue(tile, slot):
        base = tile * tn
        @pl.loop(0, tn)
        def _(r):
            tok = ids_ref[base + r]
            pltpu.make_async_copy(tab_hbm.at[pl.ds(tok, 1), :],
                                  gbuf.at[slot, pl.ds(r, 1), :],
                                  dsem.at[slot]).start()

    # Prime the pipeline on the very first grid step. (Because tile i's rows
    # are fetched at step i-1, this grid axis must be "arbitrary".)
    @pl.when(i == 0)
    def _():
        issue(0, 0)

    slot = i % 2

    # Prefetch tile i+1's rows into the other slot while tile i's DMAs land
    # and while tile i is computed / written back.
    @pl.when(i + 1 < nt)
    def _():
        issue(i + 1, (i + 1) % 2)

    # Drain the current slot: wait on the EXACT descriptors that were issued
    # (token ids re-read from SMEM), one wait per started copy.
    base = i * tn
    @pl.loop(0, tn)
    def _(r):
        tok = ids_ref[base + r]
        pltpu.make_async_copy(tab_hbm.at[pl.ds(tok, 1), :],
                              gbuf.at[slot, pl.ds(r, 1), :],
                              dsem.at[slot]).wait()

    _finish_tile(hidden, n_segments, eps, seq_len,
                 gbuf[slot].astype(jnp.float32),
                 seg_ref[...], pos_ref[...], consts_ref[...], out_ref)


# --------------------------------------------------------------------------
# Input-independent precompute (parameter fusion + lane padding).
# --------------------------------------------------------------------------
def prepare_kernel_params(tok_tab, w2, b2, pos_tab, seg_tab, gamma, beta,
                          *, table_dtype=jnp.float32):
    """Fuse tok_embed1 @ tok_embed2 (+bias) into one (V, H) table and pad all
    hidden-sized tensors to a lane-dense width HP = round_up(hidden, 128)."""
    hidden = w2.shape[1]
    n_segments = seg_tab.shape[0]
    hp = _round_up(hidden, 128)

    fused = jnp.dot(tok_tab.astype(jnp.float32), w2.astype(jnp.float32),
                    precision=jax.lax.Precision.HIGHEST) + b2[None, :]

    def pad_cols(a):
        a = a.astype(jnp.float32)
        if hp == hidden:
            return a
        return jnp.zeros(a.shape[:-1] + (hp,), jnp.float32).at[..., :hidden].set(a)

    # One small resident constant slab: seg rows, then gamma, then beta.
    const_rows = _round_up(n_segments + 2, 8)
    consts = jnp.zeros((const_rows, hp), jnp.float32)
    consts = consts.at[:n_segments, :hidden].set(seg_tab.astype(jnp.float32))
    consts = consts.at[n_segments, :hidden].set(gamma.astype(jnp.float32))
    consts = consts.at[n_segments + 1, :hidden].set(beta.astype(jnp.float32))

    return dict(
        fused=pad_cols(fused).astype(table_dtype),   # (V, HP)
        pos=pad_cols(pos_tab),                       # (MAX_LEN, HP) f32
        consts=consts,                               # (CR, HP) f32
        hidden=hidden, hp=hp, n_segments=n_segments,
    )


def _pick_seq_tile(batch, seq, hp, table_itemsize, budget_bytes, max_tile_rows):
    """Largest k | batch with k*seq rows per tile under the VMEM row budget.
    Steady-state per-row bytes ~= 2x f32 output double-buffer + 2x gather buf."""
    per_row = hp * (2 * 4 + 2 * table_itemsize)
    best = 1
    for k in range(1, batch + 1):
        if batch % k:
            continue
        rows = k * seq
        if rows > max_tile_rows or rows * per_row > budget_bytes:
            break
        best = k
    return best


# --------------------------------------------------------------------------
# Wrapper.
# --------------------------------------------------------------------------
def embeddings_forward(x, seg, kparams, *,
                       max_tile_rows=1024,
                       vmem_budget_bytes=12 * (1 << 20),     # safe under default
                       table_vmem_budget_bytes=8 * (1 << 20),  # scoped limits on
                       force_hbm_gather=False):                # v5e/v6e/v7x
    """x, seg: (B, S) int32. Returns (B, S, hidden) float32."""
    B, S = x.shape
    N = B * S
    assert S % 8 == 0, "sequence length must be a multiple of 8 (sublane tile)"

    hidden = kparams["hidden"]
    hp = kparams["hp"]
    nseg = kparams["n_segments"]
    fused = kparams["fused"]
    consts = kparams["consts"]
    assert kparams["pos"].shape[0] >= S, "sequence longer than max_len"
    pos = kparams["pos"][:S]                                   # (S, HP), resident

    tbytes = fused.dtype.itemsize
    table_bytes = fused.shape[0] * fused.shape[1] * tbytes
    use_vmem_table = (not force_hbm_gather) and (table_bytes <= table_vmem_budget_bytes)

    resident = pos.size * 4 + consts.size * 4 + (table_bytes if use_vmem_table else 0)
    k = _pick_seq_tile(B, S, hp, tbytes,
                       max(vmem_budget_bytes - resident, 8 * S * hp),
                       max_tile_rows)
    TN = k * S
    grid = (N // TN,)

    x_flat = x.reshape(N).astype(jnp.int32)                    # SMEM scalar prefetch
    seg_col = seg.reshape(N, 1).astype(jnp.int32)

    common_specs = [
        pl.BlockSpec((TN, 1), lambda i, ids: (i, 0)),          # segment ids
        pl.BlockSpec((S, hp), lambda i, ids: (0, 0)),          # pos slab (resident)
        pl.BlockSpec(consts.shape, lambda i, ids: (0, 0)),     # seg/gamma/beta slab
    ]
    out_spec = pl.BlockSpec((TN, hp), lambda i, ids: (i, 0))

    if use_vmem_table:
        kernel = functools.partial(emb_kernel_vmem, hidden, nseg, EPS, S)
        in_specs = common_specs + [pl.BlockSpec(fused.shape, lambda i, ids: (0, 0))]
        scratch = [pltpu.VMEM((TN, hp), fused.dtype)]
        dim_sem = ("parallel",)          # no cross-step carry -> megacore-safe
    else:
        kernel = functools.partial(emb_kernel_hbm, hidden, nseg, EPS, S)
        in_specs = common_specs + [pl.BlockSpec(memory_space=pl.ANY)]
        scratch = [pltpu.VMEM((2, TN, hp), fused.dtype),       # gather double buffer
                   pltpu.SemaphoreType.DMA((2,))]
        dim_sem = ("arbitrary",)         # prefetch carries state across steps

    out = pl.pallas_call(
        kernel,
        grid_spec=pltpu.PrefetchScalarGridSpec(
            num_scalar_prefetch=1,
            grid=grid,
            in_specs=in_specs,
            out_specs=out_spec,
            scratch_shapes=scratch),
        out_shape=jax.ShapeDtypeStruct((N, hp), jnp.float32),
        compiler_params=pltpu.CompilerParams(dimension_semantics=dim_sem),
    )(x_flat, seg_col, pos, consts, fused)

    if hp != hidden:                     # skip the extra HBM pass when lane-dense
        out = out[:, :hidden]
    return out.reshape(B, S, hidden)


# --------------------------------------------------------------------------
# Pure-JAX reference mirroring the PyTorch module.
# --------------------------------------------------------------------------
def reference_forward(x, seg, tok_tab, w2, b2, pos_tab, seg_tab, gamma, beta,
                      eps=EPS):
    S = x.shape[1]
    fused = jnp.dot(tok_tab, w2, precision=jax.lax.Precision.HIGHEST) + b2
    e = fused[x] + pos_tab[:S][None, :, :] + seg_tab[seg]
    mean = e.mean(-1, keepdims=True)
    var = ((e - mean) ** 2).mean(-1, keepdims=True)
    return (e - mean) / jnp.sqrt(var + eps) * gamma + beta


if __name__ == "__main__":
    # Small config consistent with the module's forward.
    VOCAB, EMBED, HIDDEN, MAX_LEN, N_SEGMENTS = 64, 16, 32, 16, 2
    B, S = 4, 8

    key = jax.random.PRNGKey(0)
    ks = jax.random.split(key, 9)

    tok_tab = jax.random.normal(ks[0], (VOCAB, EMBED), jnp.float32) * 0.02
    w2 = jax.random.normal(ks[1], (EMBED, HIDDEN), jnp.float32) * 0.1
    b2 = jax.random.normal(ks[2], (HIDDEN,), jnp.float32) * 0.01
    pos_tab = jax.random.normal(ks[3], (MAX_LEN, HIDDEN), jnp.float32) * 0.02
    seg_tab = jax.random.normal(ks[4], (N_SEGMENTS, HIDDEN), jnp.float32) * 0.02
    gamma = 1.0 + 0.1 * jax.random.normal(ks[5], (HIDDEN,), jnp.float32)
    beta = 0.05 * jax.random.normal(ks[6], (HIDDEN,), jnp.float32)

    x = jax.random.randint(ks[7], (B, S), 0, VOCAB, dtype=jnp.int32)
    seg = jax.random.randint(ks[8], (B, S), 0, N_SEGMENTS, dtype=jnp.int32)

    kparams = prepare_kernel_params(tok_tab, w2, b2, pos_tab, seg_tab, gamma, beta)
    ref = reference_forward(x, seg, tok_tab, w2, b2, pos_tab, seg_tab, gamma, beta)

    # Path A: VMEM-resident fused table (the small table fits), TN = B*S, grid=1.
    out_vmem = jax.block_until_ready(embeddings_forward(x, seg, kparams))
    assert out_vmem.shape == (B, S, HIDDEN)
    np.testing.assert_allclose(np.asarray(out_vmem), np.asarray(ref),
                               atol=1e-4, rtol=1e-4)

    # Path B: HBM table + double-buffered per-row DMA gather; cap the tile at
    # one sequence so grid=(4,) and the cross-step prefetch actually cycles.
    out_hbm = jax.block_until_ready(
        embeddings_forward(x, seg, kparams,
                           force_hbm_gather=True, max_tile_rows=S))
    np.testing.assert_allclose(np.asarray(out_hbm), np.asarray(ref),
                               atol=1e-4, rtol=1e-4)

    print("KERNEL_OK")
</pallas_src>

<mosaic_0001>
module attributes {stable_mosaic.version = 11 : i64} {
  func.func @emb_kernel_vmem(%arg0: i32, %arg1: memref<32xi32, #tpu.memory_space<smem>>, %arg2: memref<32x1xi32, #tpu.memory_space<vmem>>, %arg3: memref<8x128xf32, #tpu.memory_space<vmem>>, %arg4: memref<8x128xf32, #tpu.memory_space<vmem>>, %arg5: memref<64x128xf32, #tpu.memory_space<vmem>>, %arg6: memref<32x128xf32, #tpu.memory_space<vmem>>, %arg7: memref<32x128xf32, #tpu.memory_space<vmem>>) attributes {dimension_semantics = [#tpu.dimension_semantics<parallel>], iteration_bounds = array<i64: 1>, scalar_prefetch = 1 : i64, scratch_operands = 1 : i64, tpu.core_type = #tpu.core_type<tc>, window_params = [{transform_indices = @transform_0, window_bounds = array<i64: 32, 1>}, {pipeline_mode = #tpu.pipeline_mode<synchronous>, transform_indices = @transform_1, window_bounds = array<i64: 8, 128>}, {pipeline_mode = #tpu.pipeline_mode<synchronous>, transform_indices = @transform_2, window_bounds = array<i64: 8, 128>}, {pipeline_mode = #tpu.pipeline_mode<synchronous>, transform_indices = @transform_3, window_bounds = array<i64: 64, 128>}, {transform_indices = @transform_4, window_bounds = array<i64: 32, 128>}]} {
    %c32_i32 = arith.constant 32 : i32
    %0 = arith.muli %arg0, %c32_i32 : i32
    %c0_i32 = arith.constant 0 : i32
    %c32_i32_0 = arith.constant 32 : i32
    %1 = arith.addi %c0_i32, %c32_i32_0 : i32
    %c1_i32 = arith.constant 1 : i32
    scf.for %arg8 = %c0_i32 to %1 step %c1_i32  : i32 {
      %c1_i32_18 = arith.constant 1 : i32
      %54 = arith.muli %arg8, %c1_i32_18 : i32
      %c0_i32_19 = arith.constant 0 : i32
      %55 = arith.addi %c0_i32_19, %54 : i32
      %56 = arith.addi %0, %55 : i32
      %57 = arith.index_cast %56 : i32 to index
      %58 = memref.load %arg1[%57] : memref<32xi32, #tpu.memory_space<smem>>
      %59 = arith.index_cast %58 : i32 to index
      %c0_20 = arith.constant 0 : index
      %60 = vector.load %arg5[%59, %c0_20] : memref<64x128xf32, #tpu.memory_space<vmem>>, vector<1x128xf32>
      %61 = arith.index_cast %55 : i32 to index
      %c0_21 = arith.constant 0 : index
      %62 = vector.load %arg7[%61, %c0_21] : memref<32x128xf32, #tpu.memory_space<vmem>>, vector<1x128xf32>
      tpu.vector_store %arg7[%61, %c0_21], %60 {strides = array<i32>} : memref<32x128xf32, #tpu.memory_space<vmem>>, vector<1x128xf32>,
    }
    %c32_i32_1 = arith.constant 32 : i32
    %c0 = arith.constant 0 : index
    %c0_2 = arith.constant 0 : index
    %2 = vector.load %arg7[%c0, %c0_2] : memref<32x128xf32, #tpu.memory_space<vmem>>, vector<32x128xf32>
    %c0_3 = arith.constant 0 : index
    %c0_4 = arith.constant 0 : index
    %3 = vector.load %arg2[%c0_3, %c0_4] : memref<32x1xi32, #tpu.memory_space<vmem>>, vector<32x1xi32>
    %c0_5 = arith.constant 0 : index
    %c0_6 = arith.constant 0 : index
    %4 = vector.load %arg3[%c0_5, %c0_6] : memref<8x128xf32, #tpu.memory_space<vmem>>, vector<8x128xf32>
    %c0_7 = arith.constant 0 : index
    %c0_8 = arith.constant 0 : index
    %5 = vector.load %arg4[%c0_7, %c0_8] : memref<8x128xf32, #tpu.memory_space<vmem>>, vector<8x128xf32>
    %6 = vector.shape_cast %2 : vector<32x128xf32> to vector<4x8x128xf32>
    %7 = vector.shape_cast %4 : vector<8x128xf32> to vector<1x8x128xf32>
    %8 = vector.broadcast %7 : vector<1x8x128xf32> to vector<4x8x128xf32>
    %9 = arith.addf %6, %8 : vector<4x8x128xf32>
    %10 = vector.shape_cast %3 : vector<32x1xi32> to vector<4x8x1xi32>
    %c0_i32_9 = arith.constant 0 : i32
    %11 = vector.broadcast %c0_i32_9 : i32 to vector<4x8x1xi32>
    %12 = arith.cmpi eq, %10, %11 : vector<4x8x1xi32>
    %13 = vector.extract_strided_slice %5 {offsets = [0, 0], sizes = [1, 128], strides = [1, 1]} : vector<8x128xf32> to vector<1x128xf32>
    %14 = vector.extract_strided_slice %5 {offsets = [1, 0], sizes = [1, 128], strides = [1, 1]} : vector<8x128xf32> to vector<1x128xf32>
    %15 = vector.shape_cast %12 : vector<4x8x1xi1> to vector<4x8x1xi1>
    %16 = vector.broadcast %15 : vector<4x8x1xi1> to vector<4x8x128xi1>
    %17 = vector.shape_cast %13 : vector<1x128xf32> to vector<1x1x128xf32>
    %18 = vector.broadcast %17 : vector<1x1x128xf32> to vector<4x8x128xf32>
    %19 = vector.shape_cast %14 : vector<1x128xf32> to vector<1x1x128xf32>
    %20 = vector.broadcast %19 : vector<1x1x128xf32> to vector<4x8x128xf32>
    %21 = arith.select %16, %18, %20 : vector<4x8x128xi1>, vector<4x8x128xf32>
    %22 = arith.addf %9, %21 : vector<4x8x128xf32>
    %cst = arith.constant dense<0.000000e+00> : vector<4x8xf32>
    %23 = vector.multi_reduction <add>, %22, %cst [2] : vector<4x8x128xf32> to vector<4x8xf32>
    %24 = vector.shape_cast %23 : vector<4x8xf32> to vector<4x8x1xf32>
    %cst_10 = arith.constant 3.125000e-02 : f32
    %25 = vector.broadcast %cst_10 : f32 to vector<4x8x1xf32>
    %26 = arith.mulf %24, %25 : vector<4x8x1xf32>
    %27 = vector.broadcast %26 : vector<4x8x1xf32> to vector<4x8x128xf32>
    %28 = arith.subf %22, %27 : vector<4x8x128xf32>
    %29 = tpu.iota {dimensions = array<i32: 2>} : vector<4x8x128xi32>
    %c32_i32_11 = arith.constant 32 : i32
    %30 = vector.broadcast %c32_i32_11 : i32 to vector<4x8x128xi32>
    %31 = arith.cmpi slt, %29, %30 : vector<4x8x128xi32>
    %cst_12 = arith.constant 0.000000e+00 : f32
    %32 = vector.broadcast %cst_12 : f32 to vector<4x8x128xf32>
    %33 = arith.select %31, %28, %32 : vector<4x8x128xi1>, vector<4x8x128xf32>
    %34 = arith.mulf %33, %33 : vector<4x8x128xf32>
    %cst_13 = arith.constant dense<0.000000e+00> : vector<4x8xf32>
    %35 = vector.multi_reduction <add>, %34, %cst_13 [2] : vector<4x8x128xf32> to vector<4x8xf32>
    %36 = vector.shape_cast %35 : vector<4x8xf32> to vector<4x8x1xf32>
    %cst_14 = arith.constant 3.125000e-02 : f32
    %37 = vector.broadcast %cst_14 : f32 to vector<4x8x1xf32>
    %38 = arith.mulf %36, %37 : vector<4x8x1xf32>
    %cst_15 = arith.constant 9.99999974E-6 : f32
    %39 = vector.broadcast %cst_15 : f32 to vector<4x8x1xf32>
    %40 = arith.addf %38, %39 : vector<4x8x1xf32>
    %41 = math.rsqrt %40 : vector<4x8x1xf32>
    %42 = vector.extract_strided_slice %5 {offsets = [2, 0], sizes = [1, 128], strides = [1, 1]} : vector<8x128xf32> to vector<1x128xf32>
    %43 = vector.extract_strided_slice %5 {offsets = [3, 0], sizes = [1, 128], strides = [1, 1]} : vector<8x128xf32> to vector<1x128xf32>
    %44 = vector.broadcast %41 : vector<4x8x1xf32> to vector<4x8x128xf32>
    %45 = arith.mulf %33, %44 : vector<4x8x128xf32>
    %46 = vector.shape_cast %42 : vector<1x128xf32> to vector<1x1x128xf32>
    %47 = vector.broadcast %46 : vector<1x1x128xf32> to vector<4x8x128xf32>
    %48 = arith.mulf %45, %47 : vector<4x8x128xf32>
    %49 = vector.shape_cast %43 : vector<1x128xf32> to vector<1x1x128xf32>
    %50 = vector.broadcast %49 : vector<1x1x128xf32> to vector<4x8x128xf32>
    %51 = arith.addf %48, %50 : vector<4x8x128xf32>
    %52 = vector.shape_cast %51 : vector<4x8x128xf32> to vector<32x128xf32>
    %c0_16 = arith.constant 0 : index
    %c0_17 = arith.constant 0 : index
    %53 = vector.load %arg6[%c0_16, %c0_17] : memref<32x128xf32, #tpu.memory_space<vmem>>, vector<32x128xf32>
    tpu.vector_store %arg6[%c0_16, %c0_17], %52 {strides = array<i32>} : memref<32x128xf32, #tpu.memory_space<vmem>>, vector<32x128xf32>,
    return
  }
  func.func @transform_0(%arg0: i32, %arg1: memref<32xi32, #tpu.memory_space<smem>>) -> (i32, i32) {
    %c0_i32 = arith.constant 0 : i32
    %c0_i32_0 = arith.constant 0 : i32
    return %arg0, %c0_i32 : i32, i32
  }
  func.func @transform_1(%arg0: i32, %arg1: memref<32xi32, #tpu.memory_space<smem>>) -> (i32, i32) {
    %c0_i32 = arith.constant 0 : i32
    %c0_i32_0 = arith.constant 0 : i32
    %c0_i32_1 = arith.constant 0 : i32
    return %c0_i32, %c0_i32_0 : i32, i32
  }
  func.func @transform_2(%arg0: i32, %arg1: memref<32xi32, #tpu.memory_space<smem>>) -> (i32, i32) {
    %c0_i32 = arith.constant 0 : i32
    %c0_i32_0 = arith.constant 0 : i32
    %c0_i32_1 = arith.constant 0 : i32
    return %c0_i32, %c0_i32_0 : i32, i32
  }
  func.func @transform_3(%arg0: i32, %arg1: memref<32xi32, #tpu.memory_space<smem>>) -> (i32, i32) {
    %c0_i32 = arith.constant 0 : i32
    %c0_i32_0 = arith.constant 0 : i32
    %c0_i32_1 = arith.constant 0 : i32
    return %c0_i32, %c0_i32_0 : i32, i32
  }
  func.func @transform_4(%arg0: i32, %arg1: memref<32xi32, #tpu.memory_space<smem>>) -> (i32, i32) {
    %c0_i32 = arith.constant 0 : i32
    %c0_i32_0 = arith.constant 0 : i32
    return %arg0, %c0_i32 : i32, i32
  }
}

</mosaic_0001>

<llo_original>
// kernel: tpu_custom_call.1
$region0: #{tpu_custom_call.1}
  #allocation0 [shape = 'u32[]', space=smem, size = 0x4, offset = 0x4, fixed_abs, tag = 'smem constant byte address 0x4 - core index']
  #allocation1 [shape = 'u32[144,128]{1,0:T(1,128)}', space=vmem, size = 0x12000, scoped, tag = 'internal scratch']
  #allocation2 [shape = 'f32[32,128]{1,0:T(8,128)}', space=vmem, size = 0x4000, scoped, tag = 'scratch operand']
  #allocation3 [shape = 's32[1]{0}', space=sflag, size = 0x4, scoped, tag = 'scoped memory for tpu_custom_call.1']
  #allocation4 [shape = 'u8[512]{0}', space=smem, size = 0x200, scoped, tag = 'prefetched SMEM operand 0']
  %s0 = inlined_call_operand.vmem [shape: s32[32], index: 0, kind: input, shape index: {}]
  %s1 = inlined_call_operand.vmem [shape: s32[32,1], index: 1, kind: input, shape index: {}]
  %s2 = inlined_call_operand.vmem [shape: f32[8,128], index: 2, kind: input, shape index: {}]
  %s3 = inlined_call_operand.vmem [shape: f32[8,128], index: 3, kind: input, shape index: {}]
  %s4 = inlined_call_operand.hbm [shape: f32[64,128], index: 4, kind: input, shape index: {}]
  %s5 = inlined_call_operand.hbm [shape: f32[32,128], index: 5, kind: output, shape index: {}]
  %s6 = sld [smem:[#allocation0]]
  $region37: #{tpu_custom_call.1} parent=0
    _
  %s8 = ssub.s32 1, %s6
  %s9 = scalar_select 0, %s8, %s6
  %s10 = sshll.u32 %s0, 4
  %s11 = int_to_ptr.vmem [resolvable:$true] %s10
  %13 = dma.vmem_to_smem %s11, 16, [#allocation4], [#allocation3]
  %14 = dma.done [#allocation3], 16
  %15 = sfence
  $region1: #{tpu_custom_call.1} parent=0
    #allocation5 [shape = 'u8[32768]{0}', space=vmem, size = 0x8000, scoped, tag = 'input window, operand 4, single buffered']
    #allocation6 [shape = 's32[1]{0}', space=sflag, size = 0x4, scoped, tag = 'scoped memory for tpu_custom_call.1']
    #allocation7 [shape = 's32[1]{0}', space=sflag, size = 0x4, scoped, tag = 'scoped memory for tpu_custom_call.1']
    #allocation8 [shape = 'u8[16384]{0}', space=vmem, size = 0x4000, scoped, tag = 'output window, operand 0, single buffered']
    %16 = vsyncpa [#allocation6], 0
    %17 = vsyncpa [#allocation7], 0
    // Predicated region
    $region2: #{tpu_custom_call.1} parent=1 // pred_check
      _
    $region3: #{tpu_custom_call.1} parent=1 // pred_check_branch
      %19 = sbr.rel (0) target = $region5
    $region4: #{tpu_custom_call.1} parent=1 // pred_region
      _
    $region5: #{tpu_custom_call.1} parent=1 // pred_fallthru
      _
    // Predicated region
    $region6: #{tpu_custom_call.1} parent=1 // pred_check
      _
    $region7: #{tpu_custom_call.1} parent=1 // pred_check_branch
      %21 = sbr.rel (0) target = $region9
    $region8: #{tpu_custom_call.1} parent=1 // pred_region
      _
    $region9: #{tpu_custom_call.1} parent=1 // pred_fallthru
      _
    // Predicated region
    $region10: #{tpu_custom_call.1} parent=1 // pred_check
      _
    $region11: #{tpu_custom_call.1} parent=1 // pred_check_branch
      %23 = sbr.rel (0) target = $region13
    $region12: #{tpu_custom_call.1} parent=1 // pred_region
      _
    $region13: #{tpu_custom_call.1} parent=1 // pred_fallthru
      _
    // Predicated region
    $region14: #{tpu_custom_call.1} parent=1 // pred_check
      _
    $region15: #{tpu_custom_call.1} parent=1 // pred_check_branch
      %25 = sbr.rel (0) target = $region17
    $region16: #{tpu_custom_call.1} parent=1 // pred_region
      %s27 = ssub.s32 1024, 1024
      %28 = vsyncadd [#allocation6], %s27
      %s29 = sshll.u32 [#allocation5], 4
      %s30 = int_to_ptr.vmem [resolvable:$true] %s29
      %35 = dma.hbm_to_vmem [thread:$0]  %s4, 1024, %s30, [#allocation6], 128, 128, 8
    $region17: #{tpu_custom_call.1} parent=1 // pred_fallthru
      _
    // Predicated region
    $region18: #{tpu_custom_call.1} parent=1 // pred_check
      _
    $region19: #{tpu_custom_call.1} parent=1 // pred_check_branch
      %37 = sbr.rel (0) target = $region21
    $region20: #{tpu_custom_call.1} parent=1 // pred_region
      %38 = dma.done [#allocation6], 1024
    $region21: #{tpu_custom_call.1} parent=1 // pred_fallthru
      _
    %s39 = smul.u32 0, 32
    loop: start=0, step=1, limit=32
    $region22: #{tpu_custom_call.1} parent=1 // loop_pre_header
      _
    $region23: #{tpu_custom_call.1} parent=1 // loop_header
      %s41 = sphi 0, %s45
      %p42 = scmp.ge.s32.totalorder %s41, 32
    $region24: #{tpu_custom_call.1} parent=1 // loop_header_branch
      %44 = sbr.rel (%p42) target = $region28
    $region25: #{tpu_custom_call.1} parent=1 // loop_body
      %s46 = sadd.s32 %s39, %s41
      %s47 = sld [smem:[#allocation4 + %s46]]
      %s48 = scalar_lea.vmem [#allocation5], %s47
      %v49 = vld [vmem:[%s48] sm:$0x1]
      %s50 = scalar_lea.vmem [#allocation2], %s41
      %51 = vst [vmem:[%s50] sm:$0x1] %v49
    $region26: #{tpu_custom_call.1} parent=1 // loop_footer
      %s45 = sadd.s32 1, %s41
    $region27: #{tpu_custom_call.1} parent=1 // loop_footer_branch
      %40 = sbr.rel target = $region23
    $region28: #{tpu_custom_call.1} parent=1 // loop_exit
      _
    %v52 = vld [vmem:[#allocation2] sm:$0xff]
    %v53 = vld [vmem:[#allocation2 + $0x8] sm:$0xff]
    %v54 = vld [vmem:[#allocation2 + $0x10] sm:$0xff]
    %v55 = vld [vmem:[#allocation2 + $0x18] sm:$0xff]
    %v56 = vld [vmem:[%s1] sm:$0xff]
    %v57 = vld [vmem:[%s1 + $0x8] sm:$0xff]
    %v58 = vld [vmem:[%s1 + $0x10] sm:$0xff]
    %v59 = vld [vmem:[%s1 + $0x18] sm:$0xff]
    %v60 = vld [vmem:[%s2] sm:$0xff]
    %v61 = vld [vmem:[%s3] sm:$0xff]
    %v62 = vadd.f32 %v52, %v60
    %v63 = vadd.f32 %v53, %v60
    %v64 = vadd.f32 %v54, %v60
    %v65 = vadd.f32 %v55, %v60
    %vm66 = vcmp.eq.s32.totalorder %v56, 0
    %vm67 = vcmp.eq.s32.totalorder %v57, 0
    %vm68 = vcmp.eq.s32.totalorder %v58, 0
    %vm69 = vcmp.eq.s32.totalorder %v59, 0
    %v70 = vsel %vm66, 1, 0
    %v71 = vsel %vm67, 1, 0
    %v72 = vsel %vm68, 1, 0
    %v73 = vsel %vm69, 1, 0
    %74 = vset.pattern.permute.xlu0 0
    %75 = vperm.xlu0 %74, %v70
    %v76 = vpop.permute.xlu0 %75
    %77 = vset.pattern.permute.xlu0 0
    %78 = vperm.xlu0 %77, %v71
    %v79 = vpop.permute.xlu0 %78
    %80 = vset.pattern.permute.xlu0 0
    %81 = vperm.xlu0 %80, %v72
    %v82 = vpop.permute.xlu0 %81
    %83 = vset.pattern.permute.xlu0 0
    %84 = vperm.xlu0 %83, %v73
    %v85 = vpop.permute.xlu0 %84
    %vm86 = vcmp.eq.s32.totalorder %v76, 1
    %vm87 = vcmp.eq.s32.totalorder %v79, 1
    %vm88 = vcmp.eq.s32.totalorder %v82, 1
    %vm89 = vcmp.eq.s32.totalorder %v85, 1
    %v90 = vlaneseq
    %v91 = vshrl.u32 %v90, 7
    %v92 = vsub.s32 0, %v91
    %v93 = vrot.slane %v61, %v92
    %v94 = vlaneseq
    %v95 = vshrl.u32 %v94, 7
    %v96 = vsub.s32 1, %v95
    %v97 = vrot.slane %v61, %v96
    %v98 = vsel %vm86, %v93, %v97
    %v99 = vsel %vm87, %v93, %v97
    %v100 = vsel %vm88, %v93, %v97
    %v101 = vsel %vm89, %v93, %v97
    %v102 = vadd.f32 %v62, %v98
    %v103 = vadd.f32 %v63, %v99
    %v104 = vadd.f32 %v64, %v100
    %v105 = vadd.f32 %v65, %v101
    %106 = vadd.xlane.f32.xlu0 %v102
    %v107 = vpop.xlane.xlu0 %106
    %108 = vadd.xlane.f32.xlu0 %v103
    %v109 = vpop.xlane.xlu0 %108
    %110 = vadd.xlane.f32.xlu0 %v104
    %v111 = vpop.xlane.xlu0 %110
    %112 = vadd.xlane.f32.xlu0 %v105
    %v113 = vpop.xlane.xlu0 %112
    %v114 = vmul.f32 %v107, 0.03125
    %v115 = vmul.f32 %v109, 0.03125
    %v116 = vmul.f32 %v111, 0.03125
    %v117 = vmul.f32 %v113, 0.03125
    %v118 = vsub.f32 %v102, %v114
    %v119 = vsub.f32 %v103, %v115
    %v120 = vsub.f32 %v104, %v116
    %v121 = vsub.f32 %v105, %v117
    %v122 = vlaneseq
    %v123 = vand.u32 %v122, 127
    %vm124 = vcmp.lt.s32.totalorder %v123, 32
    %v125 = vsel %vm124, %v118, 0.0
    %v126 = vsel %vm124, %v119, 0.0
    %v127 = vsel %vm124, %v120, 0.0
    %v128 = vsel %vm124, %v121, 0.0
    %v129 = vmul.f32 %v125, %v125
    %v130 = vmul.f32 %v126, %v126
    %v131 = vmul.f32 %v127, %v127
    %v132 = vmul.f32 %v128, %v128
    %133 = vadd.xlane.f32.xlu0 %v129
    %v134 = vpop.xlane.xlu0 %133
    %135 = vadd.xlane.f32.xlu0 %v130
    %v136 = vpop.xlane.xlu0 %135
    %137 = vadd.xlane.f32.xlu0 %v131
    %v138 = vpop.xlane.xlu0 %137
    %139 = vadd.xlane.f32.xlu0 %v132
    %v140 = vpop.xlane.xlu0 %139
    %v141 = vmul.f32 %v134, 0.03125
    %v142 = vmul.f32 %v136, 0.03125
    %v143 = vmul.f32 %v138, 0.03125
    %v144 = vmul.f32 %v140, 0.03125
    %v145 = vadd.f32 %v141, 1e-05
    %v146 = vadd.f32 %v142, 1e-05
    %v147 = vadd.f32 %v143, 1e-05
    %v148 = vadd.f32 %v144, 1e-05
    %v149 = vrsqrt.pop %v145
    %v150 = vrsqrt.pop %v146
    %v151 = vrsqrt.pop %v147
    %v152 = vrsqrt.pop %v148
    %v153 = vmul.f32 %v125, %v149
    %v154 = vmul.f32 %v126, %v150
    %v155 = vmul.f32 %v127, %v151
    %v156 = vmul.f32 %v128, %v152
    %v157 = vlaneseq
    %v158 = vshrl.u32 %v157, 7
    %v159 = vsub.s32 2, %v158
    %v160 = vrot.slane %v61, %v159
    %v161 = vmul.f32 %v153, %v160
    %v162 = vmul.f32 %v154, %v160
    %v163 = vmul.f32 %v155, %v160
    %v164 = vmul.f32 %v156, %v160
    %v165 = vlaneseq
    %v166 = vshrl.u32 %v165, 7
    %v167 = vsub.s32 3, %v166
    %v168 = vrot.slane %v61, %v167
    %v169 = vadd.f32 %v161, %v168
    %v170 = vadd.f32 %v162, %v168
    %v171 = vadd.f32 %v163, %v168
    %v172 = vadd.f32 %v164, %v168
    %173 = vst [vmem:[#allocation8] sm:$0xff] %v169
    %174 = vst [vmem:[#allocation8 + $0x8] sm:$0xff] %v170
    %175 = vst [vmem:[#allocation8 + $0x10] sm:$0xff] %v171
    %176 = vst [vmem:[#allocation8 + $0x18] sm:$0xff] %v172
    // Predicated region
    $region29: #{tpu_custom_call.1} parent=1 // pred_check
      _
    $region30: #{tpu_custom_call.1} parent=1 // pred_check_branch
      %178 = sbr.rel (0) target = $region32
    $region31: #{tpu_custom_call.1} parent=1 // pred_region
      %s180 = ssub.s32 512, 512
      %181 = vsyncadd [#allocation7], %s180
      %s182 = sshll.u32 [#allocation8], 4
      %s183 = int_to_ptr.vmem [resolvable:$true] %s182
      %188 = dma.vmem_to_hbm [thread:$0]  %s183, 512, %s5, [#allocation7], 128, 128, 8
    $region32: #{tpu_custom_call.1} parent=1 // pred_fallthru
      _
    // Predicated region
    $region33: #{tpu_custom_call.1} parent=1 // pred_check
      _
    $region34: #{tpu_custom_call.1} parent=1 // pred_check_branch
      %190 = sbr.rel (0) target = $region36
    $region35: #{tpu_custom_call.1} parent=1 // pred_region
      %191 = dma.done [#allocation7], 512
    $region36: #{tpu_custom_call.1} parent=1 // pred_fallthru
      _
    %192 = vsyncpa [#allocation6], 1
    %193 = vsyncpa [#allocation7], 1

</llo_original>
